<compile_context>
chip_gen: v5e
topology: v5e:2x2
jax: 0.10.0
libtpu: 0.0.40
codegen_flags: <defaults>
</compile_context>

<pallas_src>
import functools

import jax
import jax.numpy as jnp
from jax.experimental import pallas as pl
from jax.experimental.pallas import tpu as pltpu

_LANE = 128      # vreg lane width (f32)
_SUBLANE = 8     # vreg sublane count (f32)
_MAX_BATCH_TILE = 256


def _round_up(n, m):
    return ((n + m - 1) // m) * m


def _mlp_kernel(x_ref, w_ref, b_ref, o_ref, *, n_layers):
    """Fused MLP forward over one batch tile.

    x_ref : (tb, Dmax)            padded activations tile
    w_ref : (L, Dmax, Dmax)       all packed, padded weights (resident in VMEM)
    b_ref : (L, 1, Dmax)          all packed, padded biases
    o_ref : (tb, Dmax)            output tile
    Layer loop is statically unrolled; w_ref[i] / b_ref[i] are zero-cost static views.
    """
    h = x_ref[...]
    for i in range(n_layers):                      # static unrolled layer loop
        # (1, Dmax) bias broadcasts on the VPU; f32 matmul accumulates in f32 on the MXU.
        h = jnp.dot(h, w_ref[i], preferred_element_type=jnp.float32) + b_ref[i]
        if i < n_layers - 1:
            h = jnp.tanh(h)                        # activation_function = torch.nn.Tanh()
    o_ref[...] = h


def prepare_params(params):
    """One-time packing of PyTorch-style params into padded, packed device slabs.

    params: list of (W, b) with W: [in, out], b: [1, out].
    Returns a dict with:
      w_all : (L, Dmax, Dmax) f32   zero-padded weights
      b_all : (L, 1, Dmax)    f32   zero-padded biases
      plus static metadata (dim_in, dim_out, dmax, n_layers).
    Uniform Dmax padding is forward-exact: padded weight rows only ever multiply
    zero activation columns, and padded weight/bias columns produce zero columns.
    """
    n_layers = len(params)
    dims = [params[0][0].shape[0]] + [w.shape[1] for (w, _) in params]
    dmax = max(_round_up(d, _LANE) for d in dims)

    w_all = jnp.zeros((n_layers, dmax, dmax), jnp.float32)
    b_all = jnp.zeros((n_layers, 1, dmax), jnp.float32)
    for i, (w, b) in enumerate(params):
        din, dout = w.shape
        w_all = w_all.at[i, :din, :dout].set(w.astype(jnp.float32))
        b_all = b_all.at[i, 0, :dout].set(b.astype(jnp.float32).reshape(dout))

    # TODO(synk): for large nets, store w_all in bfloat16 on v6e/v7x (MXU is bf16-native,
    # halves weight DMA) and tile the layer loop (reduction axis last, pl.Buffered(2))
    # once resident weights no longer fit v7x's 64 MiB VMEM.
    return {
        "w_all": w_all,
        "b_all": b_all,
        "dim_in": dims[0],
        "dim_out": dims[-1],
        "dmax": dmax,
        "n_layers": n_layers,
    }


def hidden_layers_net_forward(x, prep):
    """Forward pass of HiddenLayersNet as a single fused Pallas kernel.

    x: [batch, dim_in].  prep: output of prepare_params() (padding done once, not per call).
    """
    x = x.astype(jnp.float32)
    batch, dim_in = x.shape
    assert dim_in == prep["dim_in"]
    dmax = prep["dmax"]
    n_layers = prep["n_layers"]

    # Batch tiling: degenerate (grid=(1,)) for tiny batch; parallel-sharded across
    # TensorCores (v7x has 2) and software-pipelined once batch grows.
    batch_p = _round_up(max(batch, 1), _SUBLANE)
    if batch_p <= _MAX_BATCH_TILE:
        tb = batch_p
    else:
        tb = _MAX_BATCH_TILE
        batch_p = _round_up(batch_p, tb)
    grid = (batch_p // tb,)

    # The ONLY per-call wrapper op: zero-pad x to the aligned (batch_p, Dmax) slab.
    x_p = jnp.zeros((batch_p, dmax), jnp.float32).at[:batch, :dim_in].set(x)

    # Explicit scoped-VMEM budget (v5e defaults to only 16 MiB; v7x physical is 64 MiB).
    vmem_bytes = 4 * (
        2 * tb * dmax                    # x double-buffer
        + 2 * tb * dmax                  # out double-buffer
        + 2 * n_layers * dmax * dmax     # packed weights (budget 2 buffers)
        + 2 * n_layers * dmax            # packed biases
        + 2 * tb * dmax                  # activation headroom
    )
    vmem_limit = int(min(max(vmem_bytes + (2 << 20), 4 << 20), 64 << 20))

    kernel = functools.partial(_mlp_kernel, n_layers=n_layers)
    out_p = pl.pallas_call(
        kernel,
        out_shape=jax.ShapeDtypeStruct((batch_p, dmax), jnp.float32),
        grid=grid,
        in_specs=[
            pl.BlockSpec((tb, dmax), lambda m: (m, 0)),
            pl.BlockSpec((n_layers, dmax, dmax), lambda m: (0, 0, 0)),   # resident weights
            pl.BlockSpec((n_layers, 1, dmax), lambda m: (0, 0, 0)),      # resident biases
        ],
        out_specs=pl.BlockSpec((tb, dmax), lambda m: (m, 0)),
        compiler_params=pltpu.CompilerParams(
            dimension_semantics=("parallel",),
            vmem_limit_bytes=vmem_limit,
        ),
    )(x_p, prep["w_all"], prep["b_all"])

    return out_p[:batch, : prep["dim_out"]]


def init_params(key, dim_in, dim_hidden_layers, dim_out):
    """Deterministic init mimicking torch.nn.Linear default:
    U(-1/sqrt(fan_in), 1/sqrt(fan_in)) for both weight and bias."""
    ann_dims = [dim_in] + list(dim_hidden_layers) + [dim_out]
    params = []
    for i in range(len(ann_dims) - 1):
        fan_in, fan_out = ann_dims[i], ann_dims[i + 1]
        key, kw, kb = jax.random.split(key, 3)
        bound = 1.0 / (fan_in ** 0.5)
        w = jax.random.uniform(
            kw, (fan_in, fan_out), jnp.float32, minval=-bound, maxval=bound
        )
        b = jax.random.uniform(
            kb, (1, fan_out), jnp.float32, minval=-bound, maxval=bound
        )
        params.append((w, b))
    return params


if __name__ == "__main__":
    key = jax.random.PRNGKey(0)

    # Module config: dim_in=4, hidden layers [32, 32], dim_out=3, activation=Tanh
    dim_in = 4
    dim_hidden_layers = [32, 32]
    dim_out = 3
    batch = 8

    kx, kp = jax.random.split(key)
    x = jax.random.normal(kx, (batch, dim_in), jnp.float32)
    params = init_params(kp, dim_in, dim_hidden_layers, dim_out)

    # One-time parameter packing (hoisted out of the per-call forward).
    prep = prepare_params(params)
    prep = jax.tree_util.tree_map(
        lambda v: jax.block_until_ready(v) if isinstance(v, jax.Array) else v, prep
    )

    out = hidden_layers_net_forward(x, prep)
    out = jax.block_until_ready(out)

    # Pure-JAX reference (same semantics as the PyTorch forward; same default-precision
    # matmul path, so allclose is a fair check).
    ref = x
    for i, (w, b) in enumerate(params):
        ref = ref @ w + b
        if i < len(params) - 1:
            ref = jnp.tanh(ref)
    assert out.shape == (batch, dim_out)
    assert jnp.allclose(out, ref, atol=1e-5, rtol=1e-5)

    print("KERNEL_OK")
</pallas_src>

<mosaic_0001>
module attributes {stable_mosaic.version = 11 : i64} {
  func.func @_mlp_kernel(%arg0: i32, %arg1: memref<8x128xf32, #tpu.memory_space<vmem>>, %arg2: memref<3x128x128xf32, #tpu.memory_space<vmem>>, %arg3: memref<3x1x128xf32, #tpu.memory_space<vmem>>, %arg4: memref<8x128xf32, #tpu.memory_space<vmem>>) attributes {dimension_semantics = [#tpu.dimension_semantics<parallel>], iteration_bounds = array<i64: 1>, scalar_prefetch = 0 : i64, scratch_operands = 0 : i64, tpu.core_type = #tpu.core_type<tc>, window_params = [{transform_indices = @transform_0, window_bounds = array<i64: 8, 128>}, {pipeline_mode = #tpu.pipeline_mode<synchronous>, transform_indices = @transform_1, window_bounds = array<i64: 3, 128, 128>}, {pipeline_mode = #tpu.pipeline_mode<synchronous>, transform_indices = @transform_2, window_bounds = array<i64: 3, 1, 128>}, {transform_indices = @transform_3, window_bounds = array<i64: 8, 128>}]} {
    %c0 = arith.constant 0 : index
    %c0_0 = arith.constant 0 : index
    %0 = vector.load %arg1[%c0, %c0_0] : memref<8x128xf32, #tpu.memory_space<vmem>>, vector<8x128xf32>
    %c0_1 = arith.constant 0 : index
    %c0_2 = arith.constant 0 : index
    %c0_3 = arith.constant 0 : index
    %1 = vector.load %arg2[%c0_1, %c0_2, %c0_3] : memref<3x128x128xf32, #tpu.memory_space<vmem>>, vector<1x128x128xf32>
    %2 = vector.shape_cast %1 : vector<1x128x128xf32> to vector<128x128xf32>
    %cst = arith.constant dense<0.000000e+00> : vector<8x128xf32>
    %3 = tpu.matmul %0, %2, %cst {dimension_numbers = #tpu.dot_dimension_numbers<[1], [0], [0], [1], [0, 0, 1, 1], [], []>} : vector<8x128xf32>, vector<128x128xf32>, vector<8x128xf32> -> vector<8x128xf32>
    %c0_4 = arith.constant 0 : index
    %c0_5 = arith.constant 0 : index
    %c0_6 = arith.constant 0 : index
    %4 = vector.load %arg3[%c0_4, %c0_5, %c0_6] : memref<3x1x128xf32, #tpu.memory_space<vmem>>, vector<1x1x128xf32>
    %5 = vector.shape_cast %4 : vector<1x1x128xf32> to vector<1x128xf32>
    %6 = vector.broadcast %5 : vector<1x128xf32> to vector<8x128xf32>
    %7 = arith.addf %3, %6 : vector<8x128xf32>
    %8 = math.tanh %7 : vector<8x128xf32>
    %c1 = arith.constant 1 : index
    %c0_7 = arith.constant 0 : index
    %c0_8 = arith.constant 0 : index
    %9 = vector.load %arg2[%c1, %c0_7, %c0_8] : memref<3x128x128xf32, #tpu.memory_space<vmem>>, vector<1x128x128xf32>
    %10 = vector.shape_cast %9 : vector<1x128x128xf32> to vector<128x128xf32>
    %cst_9 = arith.constant dense<0.000000e+00> : vector<8x128xf32>
    %11 = tpu.matmul %8, %10, %cst_9 {dimension_numbers = #tpu.dot_dimension_numbers<[1], [0], [0], [1], [0, 0, 1, 1], [], []>} : vector<8x128xf32>, vector<128x128xf32>, vector<8x128xf32> -> vector<8x128xf32>
    %c1_10 = arith.constant 1 : index
    %c0_11 = arith.constant 0 : index
    %c0_12 = arith.constant 0 : index
    %12 = vector.load %arg3[%c1_10, %c0_11, %c0_12] : memref<3x1x128xf32, #tpu.memory_space<vmem>>, vector<1x1x128xf32>
    %13 = vector.shape_cast %12 : vector<1x1x128xf32> to vector<1x128xf32>
    %14 = vector.broadcast %13 : vector<1x128xf32> to vector<8x128xf32>
    %15 = arith.addf %11, %14 : vector<8x128xf32>
    %16 = math.tanh %15 : vector<8x128xf32>
    %c2 = arith.constant 2 : index
    %c0_13 = arith.constant 0 : index
    %c0_14 = arith.constant 0 : index
    %17 = vector.load %arg2[%c2, %c0_13, %c0_14] : memref<3x128x128xf32, #tpu.memory_space<vmem>>, vector<1x128x128xf32>
    %18 = vector.shape_cast %17 : vector<1x128x128xf32> to vector<128x128xf32>
    %cst_15 = arith.constant dense<0.000000e+00> : vector<8x128xf32>
    %19 = tpu.matmul %16, %18, %cst_15 {dimension_numbers = #tpu.dot_dimension_numbers<[1], [0], [0], [1], [0, 0, 1, 1], [], []>} : vector<8x128xf32>, vector<128x128xf32>, vector<8x128xf32> -> vector<8x128xf32>
    %c2_16 = arith.constant 2 : index
    %c0_17 = arith.constant 0 : index
    %c0_18 = arith.constant 0 : index
    %20 = vector.load %arg3[%c2_16, %c0_17, %c0_18] : memref<3x1x128xf32, #tpu.memory_space<vmem>>, vector<1x1x128xf32>
    %21 = vector.shape_cast %20 : vector<1x1x128xf32> to vector<1x128xf32>
    %22 = vector.broadcast %21 : vector<1x128xf32> to vector<8x128xf32>
    %23 = arith.addf %19, %22 : vector<8x128xf32>
    %c0_19 = arith.constant 0 : index
    %c0_20 = arith.constant 0 : index
    %24 = vector.load %arg4[%c0_19, %c0_20] : memref<8x128xf32, #tpu.memory_space<vmem>>, vector<8x128xf32>
    tpu.vector_store %arg4[%c0_19, %c0_20], %23 {strides = array<i32>} : memref<8x128xf32, #tpu.memory_space<vmem>>, vector<8x128xf32>,
    return
  }
  func.func @transform_0(%arg0: i32) -> (i32, i32) {
    %c0_i32 = arith.constant 0 : i32
    %c0_i32_0 = arith.constant 0 : i32
    return %arg0, %c0_i32 : i32, i32
  }
  func.func @transform_1(%arg0: i32) -> (i32, i32, i32) {
    %c0_i32 = arith.constant 0 : i32
    %c0_i32_0 = arith.constant 0 : i32
    %c0_i32_1 = arith.constant 0 : i32
    %c0_i32_2 = arith.constant 0 : i32
    return %c0_i32, %c0_i32_0, %c0_i32_1 : i32, i32, i32
  }
  func.func @transform_2(%arg0: i32) -> (i32, i32, i32) {
    %c0_i32 = arith.constant 0 : i32
    %c0_i32_0 = arith.constant 0 : i32
    %c0_i32_1 = arith.constant 0 : i32
    %c0_i32_2 = arith.constant 0 : i32
    return %c0_i32, %c0_i32_0, %c0_i32_1 : i32, i32, i32
  }
  func.func @transform_3(%arg0: i32) -> (i32, i32) {
    %c0_i32 = arith.constant 0 : i32
    %c0_i32_0 = arith.constant 0 : i32
    return %arg0, %c0_i32 : i32, i32
  }
}

</mosaic_0001>

<llo_original>
// kernel: tpu_custom_call.1
$region0: #{tpu_custom_call.1}
  #allocation0 [shape = 'u32[]', space=smem, size = 0x4, offset = 0x4, fixed_abs, tag = 'smem constant byte address 0x4 - core index']
  #allocation1 [shape = 'u32[72,128]{1,0:T(1,128)}', space=vmem, size = 0x9000, scoped, tag = 'internal scratch']
  %s0 = inlined_call_operand.hbm [shape: f32[8,128], index: 0, kind: input, shape index: {}]
  %s1 = inlined_call_operand.hbm [shape: f32[3,128,128], index: 1, kind: input, shape index: {}]
  %s2 = inlined_call_operand.hbm [shape: f32[3,1,128], index: 2, kind: input, shape index: {}]
  %s3 = inlined_call_operand.hbm [shape: f32[8,128], index: 3, kind: output, shape index: {}]
  %s4 = sld [smem:[#allocation0]]
  $region34: #{tpu_custom_call.1} parent=0
    _
  %s6 = ssub.s32 1, %s4
  %s7 = scalar_select 0, %s6, %s4
  $region1: #{tpu_custom_call.1} parent=0
    #allocation2 [shape = 'u8[4096]{0}', space=vmem, size = 0x1000, scoped, tag = 'input window, operand 0, single buffered']
    #allocation3 [shape = 's32[1]{0}', space=sflag, size = 0x4, scoped, tag = 'scoped memory for tpu_custom_call.1']
    #allocation4 [shape = 's32[1]{0}', space=sflag, size = 0x4, scoped, tag = 'scoped memory for tpu_custom_call.1']
    #allocation5 [shape = 'u8[196608]{0}', space=vmem, size = 0x30000, scoped, tag = 'input window, operand 1, single buffered']
    #allocation6 [shape = 's32[1]{0}', space=sflag, size = 0x4, scoped, tag = 'scoped memory for tpu_custom_call.1']
    #allocation7 [shape = 'u8[1536]{0}', space=vmem, size = 0x800, scoped, tag = 'input window, operand 2, single buffered']
    #allocation8 [shape = 'u8[4096]{0}', space=vmem, size = 0x1000, scoped, tag = 'output window, operand 0, single buffered']
    %8 = vsyncpa [#allocation3], 0
    %9 = vsyncpa [#allocation6], 0
    %10 = vsyncpa [#allocation4], 0
    // Predicated region
    $region2: #{tpu_custom_call.1} parent=1 // pred_check
      _
    $region3: #{tpu_custom_call.1} parent=1 // pred_check_branch
      %12 = sbr.rel (0) target = $region5
    $region4: #{tpu_custom_call.1} parent=1 // pred_region
      %14 = vsyncadd [#allocation3], 0
      %s16 = sshll.u32 %s0, 4
      %s17 = int_to_ptr.hbm [resolvable:$true] %s16
      %s18 = sshll.u32 [#allocation2], 4
      %s19 = int_to_ptr.vmem [resolvable:$true] %s18
      %21 = dma.hbm_to_vmem [thread:$0]  %s17, 128, %s19, [#allocation3]
    $region5: #{tpu_custom_call.1} parent=1 // pred_fallthru
      _
    // Predicated region
    $region6: #{tpu_custom_call.1} parent=1 // pred_check
      _
    $region7: #{tpu_custom_call.1} parent=1 // pred_check_branch
      %23 = sbr.rel (0) target = $region9
    $region8: #{tpu_custom_call.1} parent=1 // pred_region
      %25 = vsyncadd [#allocation6], 0
      %s26 = sshll.u32 %s1, 4
      %s27 = int_to_ptr.hbm [resolvable:$true] %s26
      %s28 = sshll.u32 [#allocation5], 4
      %s29 = int_to_ptr.vmem [resolvable:$true] %s28
      %34 = dma.hbm_to_vmem [thread:$0]  %s27, 6144, %s29, [#allocation6], 128, 128, 8
    $region9: #{tpu_custom_call.1} parent=1 // pred_fallthru
      _
    // Predicated region
    $region10: #{tpu_custom_call.1} parent=1 // pred_check
      _
    $region11: #{tpu_custom_call.1} parent=1 // pred_check_branch
      %36 = sbr.rel (0) target = $region13
    $region12: #{tpu_custom_call.1} parent=1 // pred_region
      %38 = vsyncadd [#allocation6], 0
      %s39 = sshll.u32 %s2, 4
      %s40 = int_to_ptr.hbm [resolvable:$true] %s39
      %s41 = sshll.u32 [#allocation7], 4
      %s42 = int_to_ptr.vmem [resolvable:$true] %s41
      %47 = dma.hbm_to_vmem [thread:$0]  %s40, 48, %s42, [#allocation6], 16, 16, 1
    $region13: #{tpu_custom_call.1} parent=1 // pred_fallthru
      _
    // Predicated region
    $region14: #{tpu_custom_call.1} parent=1 // pred_check
      _
    $region15: #{tpu_custom_call.1} parent=1 // pred_check_branch
      %49 = sbr.rel (0) target = $region17
    $region16: #{tpu_custom_call.1} parent=1 // pred_region
      %51 = dma.done [#allocation3], 128
    $region17: #{tpu_custom_call.1} parent=1 // pred_fallthru
      _
    // Predicated region
    $region18: #{tpu_custom_call.1} parent=1 // pred_check
      _
    $region19: #{tpu_custom_call.1} parent=1 // pred_check_branch
      %53 = sbr.rel (0) target = $region21
    $region20: #{tpu_custom_call.1} parent=1 // pred_region
      %55 = dma.done [#allocation6], 6144
    $region21: #{tpu_custom_call.1} parent=1 // pred_fallthru
      _
    // Predicated region
    $region22: #{tpu_custom_call.1} parent=1 // pred_check
      _
    $region23: #{tpu_custom_call.1} parent=1 // pred_check_branch
      %57 = sbr.rel (0) target = $region25
    $region24: #{tpu_custom_call.1} parent=1 // pred_region
      %59 = dma.done [#allocation6], 48
    $region25: #{tpu_custom_call.1} parent=1 // pred_fallthru
      _
    %v60 = vld [vmem:[#allocation2] sm:$0xff]
    %v61 = vld [vmem:[#allocation5] sm:$0xff]
    %v62 = vld [vmem:[#allocation5 + $0x8] sm:$0xff]
    %v63 = vld [vmem:[#allocation5 + $0x10] sm:$0xff]
    %v64 = vld [vmem:[#allocation5 + $0x18] sm:$0xff]
    %v65 = vld [vmem:[#allocation5 + $0x20] sm:$0xff]
    %v66 = vld [vmem:[#allocation5 + $0x28] sm:$0xff]
    %v67 = vld [vmem:[#allocation5 + $0x30] sm:$0xff]
    %v68 = vld [vmem:[#allocation5 + $0x38] sm:$0xff]
    %v69 = vld [vmem:[#allocation5 + $0x40] sm:$0xff]
    %v70 = vld [vmem:[#allocation5 + $0x48] sm:$0xff]
    %v71 = vld [vmem:[#allocation5 + $0x50] sm:$0xff]
    %v72 = vld [vmem:[#allocation5 + $0x58] sm:$0xff]
    %v73 = vld [vmem:[#allocation5 + $0x60] sm:$0xff]
    %v74 = vld [vmem:[#allocation5 + $0x68] sm:$0xff]
    %v75 = vld [vmem:[#allocation5 + $0x70] sm:$0xff]
    %v76 = vld [vmem:[#allocation5 + $0x78] sm:$0xff]
    %v77 = vld [vmem:[#allocation7] sm:$0x1]
    %v79 = vperm.slane %v77, 0
    %81 = vmatpush.msra.mxu0 %v76
    %82 = vmatpush.msra.mxu0 %v75
    %83 = vmatpush.msra.mxu0 %v74
    %84 = vmatpush.msra.mxu0 %v73
    %85 = vmatpush.msra.mxu0 %v72
    %86 = vmatpush.msra.mxu0 %v71
    %87 = vmatpush.msra.mxu0 %v70
    %88 = vmatpush.msra.mxu0 %v69
    %89 = vmatpush.msra.mxu0 %v68
    %90 = vmatpush.msra.mxu0 %v67
    %91 = vmatpush.msra.mxu0 %v66
    %92 = vmatpush.msra.mxu0 %v65
    %93 = vmatpush.msra.mxu0 %v64
    %94 = vmatpush.msra.mxu0 %v63
    %95 = vmatpush.msra.mxu0 %v62
    %96 = vmatpush.msra.mxu0 %v61
    %97 = vmatmul.f32.gmra.mxu0 %v60
    %v98 = vpop.f32.mrf.mxu0
    %v99 = vadd.f32 %v79, %v98
    %100 = vdwg.mxu0
    %v101 = vtanh.pop %v99
    %s102 = scalar_lea.vmem [#allocation5], 128
    %v103 = vld [vmem:[%s102] sm:$0xff]
    %v104 = vld [vmem:[%s102 + $0x8] sm:$0xff]
    %v105 = vld [vmem:[%s102 + $0x10] sm:$0xff]
    %v106 = vld [vmem:[%s102 + $0x18] sm:$0xff]
    %v107 = vld [vmem:[%s102 + $0x20] sm:$0xff]
    %v108 = vld [vmem:[%s102 + $0x28] sm:$0xff]
    %v109 = vld [vmem:[%s102 + $0x30] sm:$0xff]
    %v110 = vld [vmem:[%s102 + $0x38] sm:$0xff]
    %v111 = vld [vmem:[%s102 + $0x40] sm:$0xff]
    %v112 = vld [vmem:[%s102 + $0x48] sm:$0xff]
    %v113 = vld [vmem:[%s102 + $0x50] sm:$0xff]
    %v114 = vld [vmem:[%s102 + $0x58] sm:$0xff]
    %v115 = vld [vmem:[%s102 + $0x60] sm:$0xff]
    %v116 = vld [vmem:[%s102 + $0x68] sm:$0xff]
    %v117 = vld [vmem:[%s102 + $0x70] sm:$0xff]
    %v118 = vld [vmem:[%s102 + $0x78] sm:$0xff]
    %s119 = scalar_lea.vmem [#allocation7], 1
    %v120 = vld [vmem:[%s119] sm:$0x1]
    %v122 = vperm.slane %v120, 0
    %124 = vmatpush.msra.mxu0 %v118
    %125 = vmatpush.msra.mxu0 %v117
    %126 = vmatpush.msra.mxu0 %v116
    %127 = vmatpush.msra.mxu0 %v115
    %128 = vmatpush.msra.mxu0 %v114
    %129 = vmatpush.msra.mxu0 %v113
    %130 = vmatpush.msra.mxu0 %v112
    %131 = vmatpush.msra.mxu0 %v111
    %132 = vmatpush.msra.mxu0 %v110
    %133 = vmatpush.msra.mxu0 %v109
    %134 = vmatpush.msra.mxu0 %v108
    %135 = vmatpush.msra.mxu0 %v107
    %136 = vmatpush.msra.mxu0 %v106
    %137 = vmatpush.msra.mxu0 %v105
    %138 = vmatpush.msra.mxu0 %v104
    %139 = vmatpush.msra.mxu0 %v103
    %140 = vmatmul.f32.gmra.mxu0 %v101
    %v141 = vpop.f32.mrf.mxu0
    %v142 = vadd.f32 %v122, %v141
    %143 = vdwg.mxu0
    %v144 = vtanh.pop %v142
    %s145 = scalar_lea.vmem [#allocation5], 256
    %v146 = vld [vmem:[%s145] sm:$0xff]
    %v147 = vld [vmem:[%s145 + $0x8] sm:$0xff]
    %v148 = vld [vmem:[%s145 + $0x10] sm:$0xff]
    %v149 = vld [vmem:[%s145 + $0x18] sm:$0xff]
    %v150 = vld [vmem:[%s145 + $0x20] sm:$0xff]
    %v151 = vld [vmem:[%s145 + $0x28] sm:$0xff]
    %v152 = vld [vmem:[%s145 + $0x30] sm:$0xff]
    %v153 = vld [vmem:[%s145 + $0x38] sm:$0xff]
    %v154 = vld [vmem:[%s145 + $0x40] sm:$0xff]
    %v155 = vld [vmem:[%s145 + $0x48] sm:$0xff]
    %v156 = vld [vmem:[%s145 + $0x50] sm:$0xff]
    %v157 = vld [vmem:[%s145 + $0x58] sm:$0xff]
    %v158 = vld [vmem:[%s145 + $0x60] sm:$0xff]
    %v159 = vld [vmem:[%s145 + $0x68] sm:$0xff]
    %v160 = vld [vmem:[%s145 + $0x70] sm:$0xff]
    %v161 = vld [vmem:[%s145 + $0x78] sm:$0xff]
    %s162 = scalar_lea.vmem [#allocation7], 2
    %v163 = vld [vmem:[%s162] sm:$0x1]
    %v165 = vperm.slane %v163, 0
    %167 = vmatpush.msra.mxu0 %v161
    %168 = vmatpush.msra.mxu0 %v160
    %169 = vmatpush.msra.mxu0 %v159
    %170 = vmatpush.msra.mxu0 %v158
    %171 = vmatpush.msra.mxu0 %v157
    %172 = vmatpush.msra.mxu0 %v156
    %173 = vmatpush.msra.mxu0 %v155
    %174 = vmatpush.msra.mxu0 %v154
    %175 = vmatpush.msra.mxu0 %v153
    %176 = vmatpush.msra.mxu0 %v152
    %177 = vmatpush.msra.mxu0 %v151
    %178 = vmatpush.msra.mxu0 %v150
    %179 = vmatpush.msra.mxu0 %v149
    %180 = vmatpush.msra.mxu0 %v148
    %181 = vmatpush.msra.mxu0 %v147
    %182 = vmatpush.msra.mxu0 %v146
    %183 = vmatmul.f32.gmra.mxu0 %v144
    %v184 = vpop.f32.mrf.mxu0
    %v185 = vadd.f32 %v165, %v184
    %186 = vdwg.mxu0
    %187 = vst [vmem:[#allocation8] sm:$0xff] %v185
    // Predicated region
    $region26: #{tpu_custom_call.1} parent=1 // pred_check
      _
    $region27: #{tpu_custom_call.1} parent=1 // pred_check_branch
      %189 = sbr.rel (0) target = $region29
    $region28: #{tpu_custom_call.1} parent=1 // pred_region
      %191 = vsyncadd [#allocation4], 0
      %s193 = sshll.u32 [#allocation8], 4
      %s194 = int_to_ptr.vmem [resolvable:$true] %s193
      %s195 = sshll.u32 %s3, 4
      %s196 = int_to_ptr.hbm [resolvable:$true] %s195
      %198 = dma.vmem_to_hbm [thread:$0]  %s194, 128, %s196, [#allocation4]
    $region29: #{tpu_custom_call.1} parent=1 // pred_fallthru
      _
    // Predicated region
    $region30: #{tpu_custom_call.1} parent=1 // pred_check
      _
    $region31: #{tpu_custom_call.1} parent=1 // pred_check_branch
      %200 = sbr.rel (0) target = $region33
    $region32: #{tpu_custom_call.1} parent=1 // pred_region
      %202 = dma.done [#allocation4], 128
    $region33: #{tpu_custom_call.1} parent=1 // pred_fallthru
      _
    %203 = vsyncpa [#allocation3], 1
    %204 = vsyncpa [#allocation6], 1
    %205 = vsyncpa [#allocation4], 1

</llo_original>
